<compile_context>
chip_gen: v7x
topology: tpu7x:2x2x1
jax: 0.10.0
libtpu: 0.0.40
codegen_flags: <defaults>
</compile_context>

<pallas_src>
import functools

import jax
import jax.numpy as jnp
from jax import lax
from jax.experimental import pallas as pl
from jax.experimental.pallas import tpu as pltpu

MINI = 1e-10


def _round_up(x, m):
    return ((x + m - 1) // m) * m


def _cos_head_kernel(rowinv_ref, feat_ref, w_ref, o_ref, *, precision):
    # Weight tile: [tile_n, D] in the compute dtype; norms computed in f32 from the
    # resident VMEM tile (no extra HBM pass over W).  The keepdims [tile_n, 1]
    # broadcast along the lane (D) axis is layout-trivial.
    w = w_ref[...]
    w32 = w.astype(jnp.float32)
    wsq = jnp.sum(w32 * w32, axis=1, keepdims=True)          # [tile_n, 1]
    w_n = (w32 * (1.0 / (jnp.sqrt(wsq) + MINI))).astype(w.dtype)

    # MXU contraction over D: 'bd,nd->bn' (contraction on the last dim of both
    # operands; no explicit transpose of the weight tile).
    s = lax.dot_general(
        feat_ref[...], w_n,
        dimension_numbers=(((1,), (1,)), ((), ())),
        preferred_element_type=jnp.float32,
        precision=precision,
    )                                                         # [tile_b, tile_n] f32

    # Epilogue: single fused broadcast multiply.  rowinv = scale / (||feat|| + MINI)
    # was precomputed once in the wrapper ([tile_b, 1]).
    o_ref[...] = (s * rowinv_ref[...]).astype(o_ref.dtype)


def classify_head_cos(feat_v, weight, scale=20.0, *, tile_b=256, tile_n=512,
                      compute_dtype=jnp.float32):
    """feat_v: [B, D], weight: [N, D] (nn.Linear layout) -> cls_score [B, N] f32.

    `scale` may be a Python float or a traced scalar (covers the scale==-1
    learnable-parameter configuration of the PyTorch module)."""
    B, D = feat_v.shape
    N, D2 = weight.shape
    assert D == D2, "feature dims must match"

    feat32 = feat_v.astype(jnp.float32)

    # Hoisted per-row inverse feat norms with `scale` folded in: tiny [B, 1] vector,
    # computed exactly once (epsilon semantics identical to the PyTorch module).
    row_inv = scale / (jnp.sqrt(jnp.sum(feat32 * feat32, axis=1, keepdims=True)) + MINI)
    row_inv = row_inv.astype(jnp.float32)

    feat_in = feat32.astype(compute_dtype)
    w_in = weight.astype(compute_dtype)

    # Tiles: lane-dense N (multiple of 128), sublane-aligned B (multiple of 8),
    # clamped to the (rounded-up) problem size.  No host-side padding of the arrays.
    tile_b = min(_round_up(tile_b, 8), _round_up(B, 8))
    tile_n = min(_round_up(tile_n, 128), _round_up(N, 128))
    grid = (pl.cdiv(N, tile_n), pl.cdiv(B, tile_b))   # N outer (megacore split), B inner

    # VMEM budget from the actual tile footprint; cap at 48 MiB to stay v7x-safe.
    itemsize = jnp.dtype(compute_dtype).itemsize
    vmem_est = (2 * (tile_b + tile_n) * D * itemsize     # double-buffered feat + W tiles
                + 2 * tile_b * 128 * 4                   # double-buffered row_inv (lane pad)
                + 2 * tile_b * tile_n * 4)               # double-buffered output tile
    vmem_limit = int(min(max(vmem_est + (16 << 20), 32 << 20), 48 << 20))

    if jnp.dtype(compute_dtype) == jnp.dtype(jnp.float32):
        precision = lax.Precision.HIGHEST   # bit-faithful vs. the f32 PyTorch reference
    else:
        precision = lax.Precision.DEFAULT   # native bf16 MXU path

    kernel = functools.partial(_cos_head_kernel, precision=precision)

    out = pl.pallas_call(
        kernel,
        out_shape=jax.ShapeDtypeStruct((B, N), jnp.float32),
        grid_spec=pltpu.PrefetchScalarGridSpec(
            num_scalar_prefetch=0,
            grid=grid,
            in_specs=[
                pl.BlockSpec((tile_b, 1), lambda j, i: (i, 0)),   # row_inv  [B, 1]
                pl.BlockSpec((tile_b, D), lambda j, i: (i, 0)),   # feat     [B, D]
                pl.BlockSpec((tile_n, D), lambda j, i: (j, 0)),   # weight   [N, D] (held over i)
            ],
            out_specs=pl.BlockSpec((tile_b, tile_n), lambda j, i: (i, j)),
        ),
        compiler_params=pltpu.CompilerParams(
            dimension_semantics=("parallel", "parallel"),
            vmem_limit_bytes=vmem_limit,
        ),
    )(row_inv, feat_in, w_in)
    return out


def _reference(feat_v, weight, scale):
    fn = jnp.linalg.norm(feat_v, axis=1, keepdims=True)
    wn = jnp.linalg.norm(weight, axis=1, keepdims=True)
    return (feat_v / (fn + MINI)) @ (weight / (wn + MINI)).T * scale


if __name__ == "__main__":
    key = jax.random.PRNGKey(0)
    k1, k2, k3, k4 = jax.random.split(key, 4)
    scale = 20.0

    # Case 1: module-sized small shapes (B=8, in_channel=32, out_channel=16).
    feat_a = jax.random.normal(k1, (8, 32), dtype=jnp.float32)
    w_a = jax.random.normal(k2, (16, 32), dtype=jnp.float32) * 0.02
    out_a = classify_head_cos(feat_a, w_a, scale=scale)
    jax.block_until_ready(out_a)
    ref_a = _reference(feat_a, w_a, scale)
    assert out_a.shape == (8, 16)
    assert jnp.allclose(out_a, ref_a, atol=1e-3, rtol=1e-3), "mismatch (case 1)"

    # Case 2: multi-tile grid with ragged edge tiles on both axes (no padding copies).
    feat_b = jax.random.normal(k3, (136, 64), dtype=jnp.float32)
    w_b = jax.random.normal(k4, (300, 64), dtype=jnp.float32) * 0.02
    ref_b = _reference(feat_b, w_b, scale)
    out_b = classify_head_cos(feat_b, w_b, scale=scale, tile_b=64, tile_n=128)
    jax.block_until_ready(out_b)
    assert out_b.shape == (136, 300)
    assert jnp.allclose(out_b, ref_b, atol=1e-3, rtol=1e-3), "mismatch (case 2)"

    # Case 3: bf16 compute path (native MXU dtype on v6e/v7x), default tiles,
    # looser tolerance for the bf16-rounded inputs.
    out_c = classify_head_cos(feat_b, w_b, scale=scale, compute_dtype=jnp.bfloat16)
    jax.block_until_ready(out_c)
    assert out_c.shape == (136, 300)
    assert float(jnp.max(jnp.abs(out_c - ref_b))) < 0.25, "mismatch (case 3, bf16)"

    print("KERNEL_OK")
</pallas_src>

<mosaic_0001>
module attributes {stable_mosaic.version = 11 : i64} {
  func.func @_cos_head_kernel(%arg0: i32, %arg1: i32, %arg2: memref<8x1xf32, #tpu.memory_space<vmem>>, %arg3: memref<8x32xf32, #tpu.memory_space<vmem>>, %arg4: memref<128x32xf32, #tpu.memory_space<vmem>>, %arg5: memref<8x128xf32, #tpu.memory_space<vmem>>) attributes {dimension_semantics = [#tpu.dimension_semantics<parallel>, #tpu.dimension_semantics<parallel>], iteration_bounds = array<i64: 1, 1>, scalar_prefetch = 0 : i64, scratch_operands = 0 : i64, tpu.core_type = #tpu.core_type<tc>, window_params = [{transform_indices = @transform_0, window_bounds = array<i64: 8, 1>}, {transform_indices = @transform_1, window_bounds = array<i64: 8, 32>}, {transform_indices = @transform_2, window_bounds = array<i64: 128, 32>}, {transform_indices = @transform_3, window_bounds = array<i64: 8, 128>}]} {
    %c0 = arith.constant 0 : index
    %c0_0 = arith.constant 0 : index
    %0 = vector.load %arg4[%c0, %c0_0] : memref<128x32xf32, #tpu.memory_space<vmem>>, vector<128x32xf32>
    %1 = arith.mulf %0, %0 : vector<128x32xf32>
    %cst = arith.constant dense<0.000000e+00> : vector<128xf32>
    %2 = vector.multi_reduction <add>, %1, %cst [1] : vector<128x32xf32> to vector<128xf32>
    %3 = vector.shape_cast %2 : vector<128xf32> to vector<128x1xf32>
    %4 = math.sqrt %3 : vector<128x1xf32>
    %cst_1 = arith.constant 1.000000e-10 : f32
    %5 = vector.broadcast %cst_1 : f32 to vector<128x1xf32>
    %6 = arith.addf %4, %5 : vector<128x1xf32>
    %cst_2 = arith.constant 1.000000e+00 : f32
    %7 = vector.broadcast %cst_2 : f32 to vector<128x1xf32>
    %8 = arith.divf %7, %6 : vector<128x1xf32>
    %9 = vector.broadcast %8 : vector<128x1xf32> to vector<128x32xf32>
    %10 = arith.mulf %0, %9 : vector<128x32xf32>
    %c0_3 = arith.constant 0 : index
    %c0_4 = arith.constant 0 : index
    %11 = vector.load %arg3[%c0_3, %c0_4] : memref<8x32xf32, #tpu.memory_space<vmem>>, vector<8x32xf32>
    %cst_5 = arith.constant dense<0.000000e+00> : vector<8x128xf32>
    %12 = tpu.matmul %11, %10, %cst_5 {dimension_numbers = #tpu.dot_dimension_numbers<[1], [1], [0], [0], [0, 0, 1, 0], [], []>, precision = #tpu.contract_precision<fp32>} : vector<8x32xf32>, vector<128x32xf32>, vector<8x128xf32> -> vector<8x128xf32>
    %c0_6 = arith.constant 0 : index
    %c0_7 = arith.constant 0 : index
    %13 = vector.load %arg2[%c0_6, %c0_7] : memref<8x1xf32, #tpu.memory_space<vmem>>, vector<8x1xf32>
    %14 = vector.broadcast %13 : vector<8x1xf32> to vector<8x128xf32>
    %15 = arith.mulf %12, %14 : vector<8x128xf32>
    %c0_8 = arith.constant 0 : index
    %c0_9 = arith.constant 0 : index
    %16 = vector.load %arg5[%c0_8, %c0_9] : memref<8x128xf32, #tpu.memory_space<vmem>>, vector<8x128xf32>
    tpu.vector_store %arg5[%c0_8, %c0_9], %15 {strides = array<i32>} : memref<8x128xf32, #tpu.memory_space<vmem>>, vector<8x128xf32>,
    return
  }
  func.func @transform_0(%arg0: i32, %arg1: i32) -> (i32, i32) {
    %c0_i32 = arith.constant 0 : i32
    %c0_i32_0 = arith.constant 0 : i32
    return %arg1, %c0_i32 : i32, i32
  }
  func.func @transform_1(%arg0: i32, %arg1: i32) -> (i32, i32) {
    %c0_i32 = arith.constant 0 : i32
    %c0_i32_0 = arith.constant 0 : i32
    return %arg1, %c0_i32 : i32, i32
  }
  func.func @transform_2(%arg0: i32, %arg1: i32) -> (i32, i32) {
    %c0_i32 = arith.constant 0 : i32
    %c0_i32_0 = arith.constant 0 : i32
    return %arg0, %c0_i32 : i32, i32
  }
  func.func @transform_3(%arg0: i32, %arg1: i32) -> (i32, i32) {
    %c0_i32 = arith.constant 0 : i32
    return %arg1, %arg0 : i32, i32
  }
}

</mosaic_0001>

<llo_original>
// kernel: tpu_custom_call.1
$region0: #{tpu_custom_call.1}
  #allocation0 [shape = 'u32[]', space=smem, size = 0x4, offset = 0x4, fixed_abs, tag = 'smem constant byte address 0x4 - core index']
  #allocation1 [shape = 'u32[144,128]{1,0:T(1,128)}', space=vmem, size = 0x12000, scoped, tag = 'internal scratch']
  %s0 = inlined_call_operand.vmem [shape: f32[8,1], index: 0, kind: input, shape index: {}]
  %s1 = inlined_call_operand.hbm [shape: f32[8,32], index: 1, kind: input, shape index: {}]
  %s2 = inlined_call_operand.vmem [shape: f32[16,32], index: 2, kind: input, shape index: {}]
  %s3 = inlined_call_operand.hbm [shape: f32[8,16], index: 3, kind: output, shape index: {}]
  %s4 = sld [smem:[#allocation0]]
  $region26: #{tpu_custom_call.1} parent=0
    _
  %s6 = ssub.s32 1, %s4
  %s7 = scalar_select 0, %s6, %s4
  $region1: #{tpu_custom_call.1} parent=0
    #allocation2 [shape = 'u8[4096]{0}', space=vmem, size = 0x1000, scoped, tag = 'input window, operand 1, single buffered']
    #allocation3 [shape = 's32[1]{0}', space=sflag, size = 0x4, scoped, tag = 'scoped memory for tpu_custom_call.1']
    #allocation4 [shape = 's32[1]{0}', space=sflag, size = 0x4, scoped, tag = 'scoped memory for tpu_custom_call.1']
    #allocation5 [shape = 'u8[4096]{0}', space=vmem, size = 0x1000, scoped, tag = 'output window, operand 0, single buffered']
    %8 = vsyncpa [#allocation3], 0
    %9 = vsyncpa [#allocation4], 0
    // Predicated region
    $region2: #{tpu_custom_call.1} parent=1 // pred_check
      _
    $region3: #{tpu_custom_call.1} parent=1 // pred_check_branch
      %11 = sbr.rel (0) target = $region5
    $region4: #{tpu_custom_call.1} parent=1 // pred_region
      _
    $region5: #{tpu_custom_call.1} parent=1 // pred_fallthru
      _
    // Predicated region
    $region6: #{tpu_custom_call.1} parent=1 // pred_check
      _
    $region7: #{tpu_custom_call.1} parent=1 // pred_check_branch
      %13 = sbr.rel (0) target = $region9
    $region8: #{tpu_custom_call.1} parent=1 // pred_region
      %s15 = ssub.s32 128, 128
      %16 = vsyncadd [#allocation3], %s15
      %s18 = sshll.u32 [#allocation2], 4
      %s19 = int_to_ptr.vmem [resolvable:$true] %s18
      %21 = dma.hbm_to_vmem [thread:$0]  %s1, 128, %s19, [#allocation3]
    $region9: #{tpu_custom_call.1} parent=1 // pred_fallthru
      _
    // Predicated region
    $region10: #{tpu_custom_call.1} parent=1 // pred_check
      _
    $region11: #{tpu_custom_call.1} parent=1 // pred_check_branch
      %23 = sbr.rel (0) target = $region13
    $region12: #{tpu_custom_call.1} parent=1 // pred_region
      _
    $region13: #{tpu_custom_call.1} parent=1 // pred_fallthru
      _
    // Predicated region
    $region14: #{tpu_custom_call.1} parent=1 // pred_check
      _
    $region15: #{tpu_custom_call.1} parent=1 // pred_check_branch
      %25 = sbr.rel (0) target = $region17
    $region16: #{tpu_custom_call.1} parent=1 // pred_region
      %26 = dma.done [#allocation3], 128
    $region17: #{tpu_custom_call.1} parent=1 // pred_fallthru
      _
    %v27 = vld [vmem:[%s2] sm:$0xff]
    %v28 = vld [vmem:[%s2 + $0x8] sm:$0xff]
    %v29 = vld [vmem:[%s2 + $0x10] sm:$0xff]
    %v30 = vld [vmem:[%s2 + $0x18] sm:$0xff]
    %v31 = vld [vmem:[%s2 + $0x20] sm:$0xff]
    %v32 = vld [vmem:[%s2 + $0x28] sm:$0xff]
    %v33 = vld [vmem:[%s2 + $0x30] sm:$0xff]
    %v34 = vld [vmem:[%s2 + $0x38] sm:$0xff]
    %v35 = vld [vmem:[%s2 + $0x40] sm:$0xff]
    %v36 = vld [vmem:[%s2 + $0x48] sm:$0xff]
    %v37 = vld [vmem:[%s2 + $0x50] sm:$0xff]
    %v38 = vld [vmem:[%s2 + $0x58] sm:$0xff]
    %v39 = vld [vmem:[%s2 + $0x60] sm:$0xff]
    %v40 = vld [vmem:[%s2 + $0x68] sm:$0xff]
    %v41 = vld [vmem:[%s2 + $0x70] sm:$0xff]
    %v42 = vld [vmem:[%s2 + $0x78] sm:$0xff]
    %v43 = vmul.f32 %v27, %v27
    %v44 = vmul.f32 %v28, %v28
    %v45 = vmul.f32 %v29, %v29
    %v46 = vmul.f32 %v30, %v30
    %v47 = vmul.f32 %v31, %v31
    %v48 = vmul.f32 %v32, %v32
    %v49 = vmul.f32 %v33, %v33
    %v50 = vmul.f32 %v34, %v34
    %v51 = vmul.f32 %v35, %v35
    %v52 = vmul.f32 %v36, %v36
    %v53 = vmul.f32 %v37, %v37
    %v54 = vmul.f32 %v38, %v38
    %v55 = vmul.f32 %v39, %v39
    %v56 = vmul.f32 %v40, %v40
    %v57 = vmul.f32 %v41, %v41
    %v58 = vmul.f32 %v42, %v42
    %vm59 = vcmask 261120
    %v60 = vsel %vm59, %v43, 0.0
    %61 = vadd.xlane.f32.xlu0 %v60
    %v62 = vpop.xlane.xlu0 %61
    %v63 = vsel %vm59, %v44, 0.0
    %64 = vadd.xlane.f32.xlu0 %v63
    %v65 = vpop.xlane.xlu0 %64
    %v66 = vsel %vm59, %v45, 0.0
    %67 = vadd.xlane.f32.xlu0 %v66
    %v68 = vpop.xlane.xlu0 %67
    %v69 = vsel %vm59, %v46, 0.0
    %70 = vadd.xlane.f32.xlu0 %v69
    %v71 = vpop.xlane.xlu0 %70
    %v72 = vsel %vm59, %v47, 0.0
    %73 = vadd.xlane.f32.xlu0 %v72
    %v74 = vpop.xlane.xlu0 %73
    %v75 = vsel %vm59, %v48, 0.0
    %76 = vadd.xlane.f32.xlu0 %v75
    %v77 = vpop.xlane.xlu0 %76
    %v78 = vsel %vm59, %v49, 0.0
    %79 = vadd.xlane.f32.xlu0 %v78
    %v80 = vpop.xlane.xlu0 %79
    %v81 = vsel %vm59, %v50, 0.0
    %82 = vadd.xlane.f32.xlu0 %v81
    %v83 = vpop.xlane.xlu0 %82
    %v84 = vsel %vm59, %v51, 0.0
    %85 = vadd.xlane.f32.xlu0 %v84
    %v86 = vpop.xlane.xlu0 %85
    %v87 = vsel %vm59, %v52, 0.0
    %88 = vadd.xlane.f32.xlu0 %v87
    %v89 = vpop.xlane.xlu0 %88
    %v90 = vsel %vm59, %v53, 0.0
    %91 = vadd.xlane.f32.xlu0 %v90
    %v92 = vpop.xlane.xlu0 %91
    %v93 = vsel %vm59, %v54, 0.0
    %94 = vadd.xlane.f32.xlu0 %v93
    %v95 = vpop.xlane.xlu0 %94
    %v96 = vsel %vm59, %v55, 0.0
    %97 = vadd.xlane.f32.xlu0 %v96
    %v98 = vpop.xlane.xlu0 %97
    %v99 = vsel %vm59, %v56, 0.0
    %100 = vadd.xlane.f32.xlu0 %v99
    %v101 = vpop.xlane.xlu0 %100
    %v102 = vsel %vm59, %v57, 0.0
    %103 = vadd.xlane.f32.xlu0 %v102
    %v104 = vpop.xlane.xlu0 %103
    %v105 = vsel %vm59, %v58, 0.0
    %106 = vadd.xlane.f32.xlu0 %v105
    %v107 = vpop.xlane.xlu0 %106
    %v108 = vrsqrt.pop %v62
    %v109 = vmul.f32 %v62, %v108
    %vm110 = vcmp.eq.f32.partialorder %v62, inf
    %v111 = vsel %vm110, %v62, %v109
    %vm112 = vcmp.eq.f32.partialorder %v62, 0.0
    %v113 = vand.u32 %v62, 2147483648
    %v114 = vsel %vm112, %v113, %v111
    %v115 = vrsqrt.pop %v65
    %v116 = vmul.f32 %v65, %v115
    %vm117 = vcmp.eq.f32.partialorder %v65, inf
    %v118 = vsel %vm117, %v65, %v116
    %vm119 = vcmp.eq.f32.partialorder %v65, 0.0
    %v120 = vand.u32 %v65, 2147483648
    %v121 = vsel %vm119, %v120, %v118
    %v122 = vrsqrt.pop %v68
    %v123 = vmul.f32 %v68, %v122
    %vm124 = vcmp.eq.f32.partialorder %v68, inf
    %v125 = vsel %vm124, %v68, %v123
    %vm126 = vcmp.eq.f32.partialorder %v68, 0.0
    %v127 = vand.u32 %v68, 2147483648
    %v128 = vsel %vm126, %v127, %v125
    %v129 = vrsqrt.pop %v71
    %v130 = vmul.f32 %v71, %v129
    %vm131 = vcmp.eq.f32.partialorder %v71, inf
    %v132 = vsel %vm131, %v71, %v130
    %vm133 = vcmp.eq.f32.partialorder %v71, 0.0
    %v134 = vand.u32 %v71, 2147483648
    %v135 = vsel %vm133, %v134, %v132
    %v136 = vrsqrt.pop %v74
    %v137 = vmul.f32 %v74, %v136
    %vm138 = vcmp.eq.f32.partialorder %v74, inf
    %v139 = vsel %vm138, %v74, %v137
    %vm140 = vcmp.eq.f32.partialorder %v74, 0.0
    %v141 = vand.u32 %v74, 2147483648
    %v142 = vsel %vm140, %v141, %v139
    %v143 = vrsqrt.pop %v77
    %v144 = vmul.f32 %v77, %v143
    %vm145 = vcmp.eq.f32.partialorder %v77, inf
    %v146 = vsel %vm145, %v77, %v144
    %vm147 = vcmp.eq.f32.partialorder %v77, 0.0
    %v148 = vand.u32 %v77, 2147483648
    %v149 = vsel %vm147, %v148, %v146
    %v150 = vrsqrt.pop %v80
    %v151 = vmul.f32 %v80, %v150
    %vm152 = vcmp.eq.f32.partialorder %v80, inf
    %v153 = vsel %vm152, %v80, %v151
    %vm154 = vcmp.eq.f32.partialorder %v80, 0.0
    %v155 = vand.u32 %v80, 2147483648
    %v156 = vsel %vm154, %v155, %v153
    %v157 = vrsqrt.pop %v83
    %v158 = vmul.f32 %v83, %v157
    %vm159 = vcmp.eq.f32.partialorder %v83, inf
    %v160 = vsel %vm159, %v83, %v158
    %vm161 = vcmp.eq.f32.partialorder %v83, 0.0
    %v162 = vand.u32 %v83, 2147483648
    %v163 = vsel %vm161, %v162, %v160
    %v164 = vrsqrt.pop %v86
    %v165 = vmul.f32 %v86, %v164
    %vm166 = vcmp.eq.f32.partialorder %v86, inf
    %v167 = vsel %vm166, %v86, %v165
    %vm168 = vcmp.eq.f32.partialorder %v86, 0.0
    %v169 = vand.u32 %v86, 2147483648
    %v170 = vsel %vm168, %v169, %v167
    %v171 = vrsqrt.pop %v89
    %v172 = vmul.f32 %v89, %v171
    %vm173 = vcmp.eq.f32.partialorder %v89, inf
    %v174 = vsel %vm173, %v89, %v172
    %vm175 = vcmp.eq.f32.partialorder %v89, 0.0
    %v176 = vand.u32 %v89, 2147483648
    %v177 = vsel %vm175, %v176, %v174
    %v178 = vrsqrt.pop %v92
    %v179 = vmul.f32 %v92, %v178
    %vm180 = vcmp.eq.f32.partialorder %v92, inf
    %v181 = vsel %vm180, %v92, %v179
    %vm182 = vcmp.eq.f32.partialorder %v92, 0.0
    %v183 = vand.u32 %v92, 2147483648
    %v184 = vsel %vm182, %v183, %v181
    %v185 = vrsqrt.pop %v95
    %v186 = vmul.f32 %v95, %v185
    %vm187 = vcmp.eq.f32.partialorder %v95, inf
    %v188 = vsel %vm187, %v95, %v186
    %vm189 = vcmp.eq.f32.partialorder %v95, 0.0
    %v190 = vand.u32 %v95, 2147483648
    %v191 = vsel %vm189, %v190, %v188
    %v192 = vrsqrt.pop %v98
    %v193 = vmul.f32 %v98, %v192
    %vm194 = vcmp.eq.f32.partialorder %v98, inf
    %v195 = vsel %vm194, %v98, %v193
    %vm196 = vcmp.eq.f32.partialorder %v98, 0.0
    %v197 = vand.u32 %v98, 2147483648
    %v198 = vsel %vm196, %v197, %v195
    %v199 = vrsqrt.pop %v101
    %v200 = vmul.f32 %v101, %v199
    %vm201 = vcmp.eq.f32.partialorder %v101, inf
    %v202 = vsel %vm201, %v101, %v200
    %vm203 = vcmp.eq.f32.partialorder %v101, 0.0
    %v204 = vand.u32 %v101, 2147483648
    %v205 = vsel %vm203, %v204, %v202
    %v206 = vrsqrt.pop %v104
    %v207 = vmul.f32 %v104, %v206
    %vm208 = vcmp.eq.f32.partialorder %v104, inf
    %v209 = vsel %vm208, %v104, %v207
    %vm210 = vcmp.eq.f32.partialorder %v104, 0.0
    %v211 = vand.u32 %v104, 2147483648
    %v212 = vsel %vm210, %v211, %v209
    %v213 = vrsqrt.pop %v107
    %v214 = vmul.f32 %v107, %v213
    %vm215 = vcmp.eq.f32.partialorder %v107, inf
    %v216 = vsel %vm215, %v107, %v214
    %vm217 = vcmp.eq.f32.partialorder %v107, 0.0
    %v218 = vand.u32 %v107, 2147483648
    %v219 = vsel %vm217, %v218, %v216
    %v220 = vadd.f32 %v114, 1e-10
    %v221 = vadd.f32 %v121, 1e-10
    %v222 = vadd.f32 %v128, 1e-10
    %v223 = vadd.f32 %v135, 1e-10
    %v224 = vadd.f32 %v142, 1e-10
    %v225 = vadd.f32 %v149, 1e-10
    %v226 = vadd.f32 %v156, 1e-10
    %v227 = vadd.f32 %v163, 1e-10
    %v228 = vadd.f32 %v170, 1e-10
    %v229 = vadd.f32 %v177, 1e-10
    %v230 = vadd.f32 %v184, 1e-10
    %v231 = vadd.f32 %v191, 1e-10
    %v232 = vadd.f32 %v198, 1e-10
    %v233 = vadd.f32 %v205, 1e-10
    %v234 = vadd.f32 %v212, 1e-10
    %v235 = vadd.f32 %v219, 1e-10
    %v236 = vrcp.pop %v220
    %v237 = vmul.f32 1.0, %v236
    %v238 = vrcp.pop %v221
    %v239 = vmul.f32 1.0, %v238
    %v240 = vrcp.pop %v222
    %v241 = vmul.f32 1.0, %v240
    %v242 = vrcp.pop %v223
    %v243 = vmul.f32 1.0, %v242
    %v244 = vrcp.pop %v224
    %v245 = vmul.f32 1.0, %v244
    %v246 = vrcp.pop %v225
    %v247 = vmul.f32 1.0, %v246
    %v248 = vrcp.pop %v226
    %v249 = vmul.f32 1.0, %v248
    %v250 = vrcp.pop %v227
    %v251 = vmul.f32 1.0, %v250
    %v252 = vrcp.pop %v228
    %v253 = vmul.f32 1.0, %v252
    %v254 = vrcp.pop %v229
    %v255 = vmul.f32 1.0, %v254
    %v256 = vrcp.pop %v230
    %v257 = vmul.f32 1.0, %v256
    %v258 = vrcp.pop %v231
    %v259 = vmul.f32 1.0, %v258
    %v260 = vrcp.pop %v232
    %v261 = vmul.f32 1.0, %v260
    %v262 = vrcp.pop %v233
    %v263 = vmul.f32 1.0, %v262
    %v264 = vrcp.pop %v234
    %v265 = vmul.f32 1.0, %v264
    %v266 = vrcp.pop %v235
    %v267 = vmul.f32 1.0, %v266
    %v268 = vmul.f32 %v27, %v237
    %v269 = vmul.f32 %v28, %v239
    %v270 = vmul.f32 %v29, %v241
    %v271 = vmul.f32 %v30, %v243
    %v272 = vmul.f32 %v31, %v245
    %v273 = vmul.f32 %v32, %v247
    %v274 = vmul.f32 %v33, %v249
    %v275 = vmul.f32 %v34, %v251
    %v276 = vmul.f32 %v35, %v253
    %v277 = vmul.f32 %v36, %v255
    %v278 = vmul.f32 %v37, %v257
    %v279 = vmul.f32 %v38, %v259
    %v280 = vmul.f32 %v39, %v261
    %v281 = vmul.f32 %v40, %v263
    %v282 = vmul.f32 %v41, %v265
    %v283 = vmul.f32 %v42, %v267
    %v284 = vld [vmem:[#allocation2] sm:$0xff]
    %v286 = vsel %vm59, %v284, 0
    %v289 = vsel %vm59, %v268, 0
    %v292 = vsel %vm59, %v269, 0
    %v295 = vsel %vm59, %v270, 0
    %v298 = vsel %vm59, %v271, 0
    %v301 = vsel %vm59, %v272, 0
    %v304 = vsel %vm59, %v273, 0
    %v307 = vsel %vm59, %v274, 0
    %v310 = vsel %vm59, %v275, 0
    %v313 = vsel %vm59, %v276, 0
    %v316 = vsel %vm59, %v277, 0
    %v319 = vsel %vm59, %v278, 0
    %v322 = vsel %vm59, %v279, 0
    %v325 = vsel %vm59, %v280, 0
    %v328 = vsel %vm59, %v281, 0
    %v331 = vsel %vm59, %v282, 0
    %v334 = vsel %vm59, %v283, 0
    %336 = vmatprep.subr.mxu0 0.0
    %v337 = vand.u32 %v289, 4294901760
    %338 = vmatpush1.xpose.msra.mxu0 %v337
    %339 = vmatprep.subr.mxu0 0.0
    %v340 = vand.u32 %v292, 4294901760
    %341 = vmatpush1.xpose.msra.mxu0 %v340
    %342 = vmatprep.subr.mxu0 0.0
    %v343 = vand.u32 %v295, 4294901760
    %344 = vmatpush1.xpose.msra.mxu0 %v343
    %345 = vmatprep.subr.mxu0 0.0
    %v346 = vand.u32 %v298, 4294901760
    %347 = vmatpush1.xpose.msra.mxu0 %v346
    %348 = vmatprep.subr.mxu0 0.0
    %v349 = vand.u32 %v301, 4294901760
    %350 = vmatpush1.xpose.msra.mxu0 %v349
    %351 = vmatprep.subr.mxu0 0.0
    %v352 = vand.u32 %v304, 4294901760
    %353 = vmatpush1.xpose.msra.mxu0 %v352
    %354 = vmatprep.subr.mxu0 0.0
    %v355 = vand.u32 %v307, 4294901760
    %356 = vmatpush1.xpose.msra.mxu0 %v355
    %357 = vmatprep.subr.mxu0 0.0
    %v358 = vand.u32 %v310, 4294901760
    %359 = vmatpush1.xpose.msra.mxu0 %v358
    %360 = vmatprep.subr.mxu0 0.0
    %v361 = vand.u32 %v313, 4294901760
    %362 = vmatpush1.xpose.msra.mxu0 %v361
    %363 = vmatprep.subr.mxu0 0.0
    %v364 = vand.u32 %v316, 4294901760
    %365 = vmatpush1.xpose.msra.mxu0 %v364
    %366 = vmatprep.subr.mxu0 0.0
    %v367 = vand.u32 %v319, 4294901760
    %368 = vmatpush1.xpose.msra.mxu0 %v367
    %369 = vmatprep.subr.mxu0 0.0
    %v370 = vand.u32 %v322, 4294901760
    %371 = vmatpush1.xpose.msra.mxu0 %v370
    %372 = vmatprep.subr.mxu0 0.0
    %v373 = vand.u32 %v325, 4294901760
    %374 = vmatpush1.xpose.msra.mxu0 %v373
    %375 = vmatprep.subr.mxu0 0.0
    %v376 = vand.u32 %v328, 4294901760
    %377 = vmatpush1.xpose.msra.mxu0 %v376
    %378 = vmatprep.subr.mxu0 0.0
    %v379 = vand.u32 %v331, 4294901760
    %380 = vmatpush1.xpose.msra.mxu0 %v379
    %381 = vmatprep.subr.mxu0 0.0
    %v382 = vand.u32 %v334, 4294901760
    %383 = vmatpush1.xpose.msra.mxu0 %v382
    %384 = vmatprep.subr.mxu0 0.0
    %385 = vmatpush1.xpose.msra.mxu0 0.0
    %386 = vmatprep.subr.mxu0 0.0
    %387 = vmatpush1.xpose.msra.mxu0 0.0
    %388 = vmatprep.subr.mxu0 0.0
    %389 = vmatpush1.xpose.msra.mxu0 0.0
    %390 = vmatprep.subr.mxu0 0.0
    %391 = vmatpush1.xpose.msra.mxu0 0.0
    %392 = vmatprep.subr.mxu0 0.0
    %393 = vmatpush1.xpose.msra.mxu0 0.0
    %394 = vmatprep.subr.mxu0 0.0
    %395 = vmatpush1.xpose.msra.mxu0 0.0
    %396 = vmatprep.subr.mxu0 0.0
    %397 = vmatpush1.xpose.msra.mxu0 0.0
    %398 = vmatprep.subr.mxu0 0.0
    %399 = vmatpush1.xpose.msra.mxu0 0.0
    %400 = vmatprep.subr.mxu0 0.0
    %401 = vmatpush1.xpose.msra.mxu0 0.0
    %402 = vmatprep.subr.mxu0 0.0
    %403 = vmatpush1.xpose.msra.mxu0 0.0
    %404 = vmatprep.subr.mxu0 0.0
    %405 = vmatpush1.xpose.msra.mxu0 0.0
    %406 = vmatprep.subr.mxu0 0.0
    %407 = vmatpush1.xpose.msra.mxu0 0.0
    %408 = vmatprep.subr.mxu0 0.0
    %409 = vmatpush1.xpose.msra.mxu0 0.0
    %410 = vmatprep.subr.mxu0 0.0
    %411 = vmatpush1.xpose.msra.mxu0 0.0
    %412 = vmatprep.subr.mxu0 0.0
    %413 = vmatpush1.xpose.msra.mxu0 0.0
    %414 = vmatprep.subr.mxu0 0.0
    %415 = vmatpush1.xpose.msra.mxu0 0.0
    %416 = vmatprep.mubr.f32.mxu0 0.0
    %v417 = vand.u32 %v286, 4294901760
    %v418 = vsub.f32 %v286, %v417
    %v419 = vand.u32 %v418, 4294901760
    %v420 = vsub.f32 %v418, %v419
    %v421 = vand.u32 %v420, 4294901760
    %422 = vmatmul.mubr.f32.gmra.mrb[0].mxu0 %v421
    %v423 = vpop.f32.mrb[0].mxu0
    %v424 = vadd.f32 0.0, %v423
    %v425 = vpop.f32.mrb[0].mxu0
    %426 = vdwg.mxu0
    %427 = vmatprep.subr.mxu0 0.0
    %v428 = vand.u32 %v289, 4294901760
    %v429 = vsub.f32 %v289, %v428
    %v430 = vand.u32 %v429, 4294901760
    %v431 = vsub.f32 %v429, %v430
    %v432 = vand.u32 %v431, 4294901760
    %433 = vmatpush1.xpose.msra.mxu0 %v432
    %434 = vmatprep.subr.mxu0 0.0
    %v435 = vand.u32 %v292, 4294901760
    %v436 = vsub.f32 %v292, %v435
    %v437 = vand.u32 %v436, 4294901760
    %v438 = vsub.f32 %v436, %v437
    %v439 = vand.u32 %v438, 4294901760
    %440 = vmatpush1.xpose.msra.mxu0 %v439
    %441 = vmatprep.subr.mxu0 0.0
    %v442 = vand.u32 %v295, 4294901760
    %v443 = vsub.f32 %v295, %v442
    %v444 = vand.u32 %v443, 4294901760
    %v445 = vsub.f32 %v443, %v444
    %v446 = vand.u32 %v445, 4294901760
    %447 = vmatpush1.xpose.msra.mxu0 %v446
    %448 = vmatprep.subr.mxu0 0.0
    %v449 = vand.u32 %v298, 4294901760
    %v450 = vsub.f32 %v298, %v449
    %v451 = vand.u32 %v450, 4294901760
    %v452 = vsub.f32 %v450, %v451
    %v453 = vand.u32 %v452, 4294901760
    %454 = vmatpush1.xpose.msra.mxu0 %v453
    %455 = vmatprep.subr.mxu0 0.0
    %v456 = vand.u32 %v301, 4294901760
    %v457 = vsub.f32 %v301, %v456
    %v458 = vand.u32 %v457, 4294901760
    %v459 = vsub.f32 %v457, %v458
    %v460 = vand.u32 %v459, 4294901760
    %461 = vmatpush1.xpose.msra.mxu0 %v460
    %462 = vmatprep.subr.mxu0 0.0
    %v463 = vand.u32 %v304, 4294901760
    %v464 = vsub.f32 %v304, %v463
    %v465 = vand.u32 %v464, 4294901760
    %v466 = vsub.f32 %v464, %v465
    %v467 = vand.u32 %v466, 4294901760
    %468 = vmatpush1.xpose.msra.mxu0 %v467
    %469 = vmatprep.subr.mxu0 0.0
    %v470 = vand.u32 %v307, 4294901760
    %v471 = vsub.f32 %v307, %v470
    %v472 = vand.u32 %v471, 4294901760
    %v473 = vsub.f32 %v471, %v472
    %v474 = vand.u32 %v473, 4294901760
    %475 = vmatpush1.xpose.msra.mxu0 %v474
    %476 = vmatprep.subr.mxu0 0.0
    %v477 = vand.u32 %v310, 4294901760
    %v478 = vsub.f32 %v310, %v477
    %v479 = vand.u32 %v478, 4294901760
    %v480 = vsub.f32 %v478, %v479
    %v481 = vand.u32 %v480, 4294901760
    %482 = vmatpush1.xpose.msra.mxu0 %v481
    %483 = vmatprep.subr.mxu0 0.0
    %v484 = vand.u32 %v313, 4294901760
    %v485 = vsub.f32 %v313, %v484
    %v486 = vand.u32 %v485, 4294901760
    %v487 = vsub.f32 %v485, %v486
    %v488 = vand.u32 %v487, 4294901760
    %489 = vmatpush1.xpose.msra.mxu0 %v488
    %490 = vmatprep.subr.mxu0 0.0
    %v491 = vand.u32 %v316, 4294901760
    %v492 = vsub.f32 %v316, %v491
    %v493 = vand.u32 %v492, 4294901760
    %v494 = vsub.f32 %v492, %v493
    %v495 = vand.u32 %v494, 4294901760
    %496 = vmatpush1.xpose.msra.mxu0 %v495
    %497 = vmatprep.subr.mxu0 0.0
    %v498 = vand.u32 %v319, 4294901760
    %v499 = vsub.f32 %v319, %v498
    %v500 = vand.u32 %v499, 4294901760
    %v501 = vsub.f32 %v499, %v500
    %v502 = vand.u32 %v501, 4294901760
    %503 = vmatpush1.xpose.msra.mxu0 %v502
    %504 = vmatprep.subr.mxu0 0.0
    %v505 = vand.u32 %v322, 4294901760
    %v506 = vsub.f32 %v322, %v505
    %v507 = vand.u32 %v506, 4294901760
    %v508 = vsub.f32 %v506, %v507
    %v509 = vand.u32 %v508, 4294901760
    %510 = vmatpush1.xpose.msra.mxu0 %v509
    %511 = vmatprep.subr.mxu0 0.0
    %v512 = vand.u32 %v325, 4294901760
    %v513 = vsub.f32 %v325, %v512
    %v514 = vand.u32 %v513, 4294901760
    %v515 = vsub.f32 %v513, %v514
    %v516 = vand.u32 %v515, 4294901760
    %517 = vmatpush1.xpose.msra.mxu0 %v516
    %518 = vmatprep.subr.mxu0 0.0
    %v519 = vand.u32 %v328, 4294901760
    %v520 = vsub.f32 %v328, %v519
    %v521 = vand.u32 %v520, 4294901760
    %v522 = vsub.f32 %v520, %v521
    %v523 = vand.u32 %v522, 4294901760
    %524 = vmatpush1.xpose.msra.mxu0 %v523
    %525 = vmatprep.subr.mxu0 0.0
    %v526 = vand.u32 %v331, 4294901760
    %v527 = vsub.f32 %v331, %v526
    %v528 = vand.u32 %v527, 4294901760
    %v529 = vsub.f32 %v527, %v528
    %v530 = vand.u32 %v529, 4294901760
    %531 = vmatpush1.xpose.msra.mxu0 %v530
    %532 = vmatprep.subr.mxu0 0.0
    %v533 = vand.u32 %v334, 4294901760
    %v534 = vsub.f32 %v334, %v533
    %v535 = vand.u32 %v534, 4294901760
    %v536 = vsub.f32 %v534, %v535
    %v537 = vand.u32 %v536, 4294901760
    %538 = vmatpush1.xpose.msra.mxu0 %v537
    %539 = vmatprep.subr.mxu0 0.0
    %540 = vmatpush1.xpose.msra.mxu0 0.0
    %541 = vmatprep.subr.mxu0 0.0
    %542 = vmatpush1.xpose.msra.mxu0 0.0
    %543 = vmatprep.subr.mxu0 0.0
    %544 = vmatpush1.xpose.msra.mxu0 0.0
    %545 = vmatprep.subr.mxu0 0.0
    %546 = vmatpush1.xpose.msra.mxu0 0.0
    %547 = vmatprep.subr.mxu0 0.0
    %548 = vmatpush1.xpose.msra.mxu0 0.0
    %549 = vmatprep.subr.mxu0 0.0
    %550 = vmatpush1.xpose.msra.mxu0 0.0
    %551 = vmatprep.subr.mxu0 0.0
    %552 = vmatpush1.xpose.msra.mxu0 0.0
    %553 = vmatprep.subr.mxu0 0.0
    %554 = vmatpush1.xpose.msra.mxu0 0.0
    %555 = vmatprep.subr.mxu0 0.0
    %556 = vmatpush1.xpose.msra.mxu0 0.0
    %557 = vmatprep.subr.mxu0 0.0
    %558 = vmatpush1.xpose.msra.mxu0 0.0
    %559 = vmatprep.subr.mxu0 0.0
    %560 = vmatpush1.xpose.msra.mxu0 0.0
    %561 = vmatprep.subr.mxu0 0.0
    %562 = vmatpush1.xpose.msra.mxu0 0.0
    %563 = vmatprep.subr.mxu0 0.0
    %564 = vmatpush1.xpose.msra.mxu0 0.0
    %565 = vmatprep.subr.mxu0 0.0
    %566 = vmatpush1.xpose.msra.mxu0 0.0
    %567 = vmatprep.subr.mxu0 0.0
    %568 = vmatpush1.xpose.msra.mxu0 0.0
    %569 = vmatprep.subr.mxu0 0.0
    %570 = vmatpush1.xpose.msra.mxu0 0.0
    %571 = vmatprep.mubr.f32.mxu0 0.0
    %v572 = vand.u32 %v286, 4294901760
    %573 = vmatmul.mubr.f32.gmra.mrb[0].mxu0 %v572
    %v574 = vpop.f32.mrb[0].mxu0
    %v575 = vadd.f32 %v424, %v574
    %v576 = vpop.f32.mrb[0].mxu0
    %577 = vdwg.mxu0
    %578 = vmatprep.subr.mxu0 0.0
    %v579 = vand.u32 %v289, 4294901760
    %v580 = vsub.f32 %v289, %v579
    %581 = vmatpush1.xpose.msra.mxu0 %v580
    %582 = vmatprep.subr.mxu0 0.0
    %v583 = vand.u32 %v292, 4294901760
    %v584 = vsub.f32 %v292, %v583
    %585 = vmatpush1.xpose.msra.mxu0 %v584
    %586 = vmatprep.subr.mxu0 0.0
    %v587 = vand.u32 %v295, 4294901760
    %v588 = vsub.f32 %v295, %v587
    %589 = vmatpush1.xpose.msra.mxu0 %v588
    %590 = vmatprep.subr.mxu0 0.0
    %v591 = vand.u32 %v298, 4294901760
    %v592 = vsub.f32 %v298, %v591
    %593 = vmatpush1.xpose.msra.mxu0 %v592
    %594 = vmatprep.subr.mxu0 0.0
    %v595 = vand.u32 %v301, 4294901760
    %v596 = vsub.f32 %v301, %v595
    %597 = vmatpush1.xpose.msra.mxu0 %v596
    %598 = vmatprep.subr.mxu0 0.0
    %v599 = vand.u32 %v304, 4294901760
    %v600 = vsub.f32 %v304, %v599
    %601 = vmatpush1.xpose.msra.mxu0 %v600
    %602 = vmatprep.subr.mxu0 0.0
    %v603 = vand.u32 %v307, 4294901760
    %v604 = vsub.f32 %v307, %v603
    %605 = vmatpush1.xpose.msra.mxu0 %v604
    %606 = vmatprep.subr.mxu0 0.0
    %v607 = vand.u32 %v310, 4294901760
    %v608 = vsub.f32 %v310, %v607
    %609 = vmatpush1.xpose.msra.mxu0 %v608
    %610 = vmatprep.subr.mxu0 0.0
    %v611 = vand.u32 %v313, 4294901760
    %v612 = vsub.f32 %v313, %v611
    %613 = vmatpush1.xpose.msra.mxu0 %v612
    %614 = vmatprep.subr.mxu0 0.0
    %v615 = vand.u32 %v316, 4294901760
    %v616 = vsub.f32 %v316, %v615
    %617 = vmatpush1.xpose.msra.mxu0 %v616
    %618 = vmatprep.subr.mxu0 0.0
    %v619 = vand.u32 %v319, 4294901760
    %v620 = vsub.f32 %v319, %v619
    %621 = vmatpush1.xpose.msra.mxu0 %v620
    %622 = vmatprep.subr.mxu0 0.0
    %v623 = vand.u32 %v322, 4294901760
    %v624 = vsub.f32 %v322, %v623
    %625 = vmatpush1.xpose.msra.mxu0 %v624
    %626 = vmatprep.subr.mxu0 0.0
    %v627 = vand.u32 %v325, 4294901760
    %v628 = vsub.f32 %v325, %v627
    %629 = vmatpush1.xpose.msra.mxu0 %v628
    %630 = vmatprep.subr.mxu0 0.0
    %v631 = vand.u32 %v328, 4294901760
    %v632 = vsub.f32 %v328, %v631
    %633 = vmatpush1.xpose.msra.mxu0 %v632
    %634 = vmatprep.subr.mxu0 0.0
    %v635 = vand.u32 %v331, 4294901760
    %v636 = vsub.f32 %v331, %v635
    %637 = vmatpush1.xpose.msra.mxu0 %v636
    %638 = vmatprep.subr.mxu0 0.0
    %v639 = vand.u32 %v334, 4294901760
    %v640 = vsub.f32 %v334, %v639
    %641 = vmatpush1.xpose.msra.mxu0 %v640
    %642 = vmatprep.subr.mxu0 0.0
    %643 = vmatpush1.xpose.msra.mxu0 0.0
    %644 = vmatprep.subr.mxu0 0.0
    %645 = vmatpush1.xpose.msra.mxu0 0.0
    %646 = vmatprep.subr.mxu0 0.0
    %647 = vmatpush1.xpose.msra.mxu0 0.0
    %648 = vmatprep.subr.mxu0 0.0
    %649 = vmatpush1.xpose.msra.mxu0 0.0
    %650 = vmatprep.subr.mxu0 0.0
    %651 = vmatpush1.xpose.msra.mxu0 0.0
    %652 = vmatprep.subr.mxu0 0.0
    %653 = vmatpush1.xpose.msra.mxu0 0.0
    %654 = vmatprep.subr.mxu0 0.0
    %655 = vmatpush1.xpose.msra.mxu0 0.0
    %656 = vmatprep.subr.mxu0 0.0
    %657 = vmatpush1.xpose.msra.mxu0 0.0
    %658 = vmatprep.subr.mxu0 0.0
    %659 = vmatpush1.xpose.msra.mxu0 0.0
    %660 = vmatprep.subr.mxu0 0.0
    %661 = vmatpush1.xpose.msra.mxu0 0.0
    %662 = vmatprep.subr.mxu0 0.0
    %663 = vmatpush1.xpose.msra.mxu0 0.0
    %664 = vmatprep.subr.mxu0 0.0
    %665 = vmatpush1.xpose.msra.mxu0 0.0
    %666 = vmatprep.subr.mxu0 0.0
    %667 = vmatpush1.xpose.msra.mxu0 0.0
    %668 = vmatprep.subr.mxu0 0.0
    %669 = vmatpush1.xpose.msra.mxu0 0.0
    %670 = vmatprep.subr.mxu0 0.0
    %671 = vmatpush1.xpose.msra.mxu0 0.0
    %672 = vmatprep.subr.mxu0 0.0
    %673 = vmatpush1.xpose.msra.mxu0 0.0
    %674 = vmatprep.mubr.f32.mxu0 0.0
    %v675 = vand.u32 %v286, 4294901760
    %v676 = vsub.f32 %v286, %v675
    %677 = vmatmul.mubr.f32.gmra.mrb[0].mxu0 %v676
    %v678 = vpop.f32.mrb[0].mxu0
    %v679 = vadd.f32 %v575, %v678
    %v680 = vpop.f32.mrb[0].mxu0
    %681 = vdwg.mxu0
    %682 = vmatprep.subr.mxu0 0.0
    %v683 = vand.u32 %v289, 4294901760
    %684 = vmatpush1.xpose.msra.mxu0 %v683
    %685 = vmatprep.subr.mxu0 0.0
    %v686 = vand.u32 %v292, 4294901760
    %687 = vmatpush1.xpose.msra.mxu0 %v686
    %688 = vmatprep.subr.mxu0 0.0
    %v689 = vand.u32 %v295, 4294901760
    %690 = vmatpush1.xpose.msra.mxu0 %v689
    %691 = vmatprep.subr.mxu0 0.0
    %v692 = vand.u32 %v298, 4294901760
    %693 = vmatpush1.xpose.msra.mxu0 %v692
    %694 = vmatprep.subr.mxu0 0.0
    %v695 = vand.u32 %v301, 4294901760
    %696 = vmatpush1.xpose.msra.mxu0 %v695
    %697 = vmatprep.subr.mxu0 0.0
    %v698 = vand.u32 %v304, 4294901760
    %699 = vmatpush1.xpose.msra.mxu0 %v698
    %700 = vmatprep.subr.mxu0 0.0
    %v701 = vand.u32 %v307, 4294901760
    %702 = vmatpush1.xpose.msra.mxu0 %v701
    %703 = vmatprep.subr.mxu0 0.0
    %v704 = vand.u32 %v310, 4294901760
    %705 = vmatpush1.xpose.msra.mxu0 %v704
    %706 = vmatprep.subr.mxu0 0.0
    %v707 = vand.u32 %v313, 4294901760
    %708 = vmatpush1.xpose.msra.mxu0 %v707
    %709 = vmatprep.subr.mxu0 0.0
    %v710 = vand.u32 %v316, 4294901760
    %711 = vmatpush1.xpose.msra.mxu0 %v710
    %712 = vmatprep.subr.mxu0 0.0
    %v713 = vand.u32 %v319, 4294901760
    %714 = vmatpush1.xpose.msra.mxu0 %v713
    %715 = vmatprep.subr.mxu0 0.0
    %v716 = vand.u32 %v322, 4294901760
    %717 = vmatpush1.xpose.msra.mxu0 %v716
    %718 = vmatprep.subr.mxu0 0.0
    %v719 = vand.u32 %v325, 4294901760
    %720 = vmatpush1.xpose.msra.mxu0 %v719
    %721 = vmatprep.subr.mxu0 0.0
    %v722 = vand.u32 %v328, 4294901760
    %723 = vmatpush1.xpose.msra.mxu0 %v722
    %724 = vmatprep.subr.mxu0 0.0
    %v725 = vand.u32 %v331, 4294901760
    %726 = vmatpush1.xpose.msra.mxu0 %v725
    %727 = vmatprep.subr.mxu0 0.0
    %v728 = vand.u32 %v334, 4294901760
    %729 = vmatpush1.xpose.msra.mxu0 %v728
    %730 = vmatprep.subr.mxu0 0.0
    %731 = vmatpush1.xpose.msra.mxu0 0.0
    %732 = vmatprep.subr.mxu0 0.0
    %733 = vmatpush1.xpose.msra.mxu0 0.0
    %734 = vmatprep.subr.mxu0 0.0
    %735 = vmatpush1.xpose.msra.mxu0 0.0
    %736 = vmatprep.subr.mxu0 0.0
    %737 = vmatpush1.xpose.msra.mxu0 0.0
    %738 = vmatprep.subr.mxu0 0.0
    %739 = vmatpush1.xpose.msra.mxu0 0.0
    %740 = vmatprep.subr.mxu0 0.0
    %741 = vmatpush1.xpose.msra.mxu0 0.0
    %742 = vmatprep.subr.mxu0 0.0
    %743 = vmatpush1.xpose.msra.mxu0 0.0
    %744 = vmatprep.subr.mxu0 0.0
    %745 = vmatpush1.xpose.msra.mxu0 0.0
    %746 = vmatprep.subr.mxu0 0.0
    %747 = vmatpush1.xpose.msra.mxu0 0.0
    %748 = vmatprep.subr.mxu0 0.0
    %749 = vmatpush1.xpose.msra.mxu0 0.0
    %750 = vmatprep.subr.mxu0 0.0
    %751 = vmatpush1.xpose.msra.mxu0 0.0
    %752 = vmatprep.subr.mxu0 0.0
    %753 = vmatpush1.xpose.msra.mxu0 0.0
    %754 = vmatprep.subr.mxu0 0.0
    %755 = vmatpush1.xpose.msra.mxu0 0.0
    %756 = vmatprep.subr.mxu0 0.0
    %757 = vmatpush1.xpose.msra.mxu0 0.0
    %758 = vmatprep.subr.mxu0 0.0
    %759 = vmatpush1.xpose.msra.mxu0 0.0
    %760 = vmatprep.subr.mxu0 0.0
    %761 = vmatpush1.xpose.msra.mxu0 0.0
    %762 = vmatprep.mubr.f32.mxu0 0.0
    %v763 = vand.u32 %v286, 4294901760
    %v764 = vsub.f32 %v286, %v763
    %v765 = vand.u32 %v764, 4294901760
    %766 = vmatmul.mubr.f32.gmra.mrb[0].mxu0 %v765
    %v767 = vpop.f32.mrb[0].mxu0
    %v768 = vadd.f32 %v679, %v767
    %v769 = vpop.f32.mrb[0].mxu0
    %770 = vdwg.mxu0
    %771 = vmatprep.subr.mxu0 0.0
    %v772 = vand.u32 %v289, 4294901760
    %v773 = vsub.f32 %v289, %v772
    %v774 = vand.u32 %v773, 4294901760
    %775 = vmatpush1.xpose.msra.mxu0 %v774
    %776 = vmatprep.subr.mxu0 0.0
    %v777 = vand.u32 %v292, 4294901760
    %v778 = vsub.f32 %v292, %v777
    %v779 = vand.u32 %v778, 4294901760
    %780 = vmatpush1.xpose.msra.mxu0 %v779
    %781 = vmatprep.subr.mxu0 0.0
    %v782 = vand.u32 %v295, 4294901760
    %v783 = vsub.f32 %v295, %v782
    %v784 = vand.u32 %v783, 4294901760
    %785 = vmatpush1.xpose.msra.mxu0 %v784
    %786 = vmatprep.subr.mxu0 0.0
    %v787 = vand.u32 %v298, 4294901760
    %v788 = vsub.f32 %v298, %v787
    %v789 = vand.u32 %v788, 4294901760
    %790 = vmatpush1.xpose.msra.mxu0 %v789
    %791 = vmatprep.subr.mxu0 0.0
    %v792 = vand.u32 %v301, 4294901760
    %v793 = vsub.f32 %v301, %v792
    %v794 = vand.u32 %v793, 4294901760
    %795 = vmatpush1.xpose.msra.mxu0 %v794
    %796 = vmatprep.subr.mxu0 0.0
    %v797 = vand.u32 %v304, 4294901760
    %v798 = vsub.f32 %v304, %v797
    %v799 = vand.u32 %v798, 4294901760
    %800 = vmatpush1.xpose.msra.mxu0 %v799
    %801 = vmatprep.subr.mxu0 0.0
    %v802 = vand.u32 %v307, 4294901760
    %v803 = vsub.f32 %v307, %v802
    %v804 = vand.u32 %v803, 4294901760
    %805 = vmatpush1.xpose.msra.mxu0 %v804
    %806 = vmatprep.subr.mxu0 0.0
    %v807 = vand.u32 %v310, 4294901760
    %v808 = vsub.f32 %v310, %v807
    %v809 = vand.u32 %v808, 4294901760
    %810 = vmatpush1.xpose.msra.mxu0 %v809
    %811 = vmatprep.subr.mxu0 0.0
    %v812 = vand.u32 %v313, 4294901760
    %v813 = vsub.f32 %v313, %v812
    %v814 = vand.u32 %v813, 4294901760
    %815 = vmatpush1.xpose.msra.mxu0 %v814
    %816 = vmatprep.subr.mxu0 0.0
    %v817 = vand.u32 %v316, 4294901760
    %v818 = vsub.f32 %v316, %v817
    %v819 = vand.u32 %v818, 4294901760
    %820 = vmatpush1.xpose.msra.mxu0 %v819
    %821 = vmatprep.subr.mxu0 0.0
    %v822 = vand.u32 %v319, 4294901760
    %v823 = vsub.f32 %v319, %v822
    %v824 = vand.u32 %v823, 4294901760
    %825 = vmatpush1.xpose.msra.mxu0 %v824
    %826 = vmatprep.subr.mxu0 0.0
    %v827 = vand.u32 %v322, 4294901760
    %v828 = vsub.f32 %v322, %v827
    %v829 = vand.u32 %v828, 4294901760
    %830 = vmatpush1.xpose.msra.mxu0 %v829
    %831 = vmatprep.subr.mxu0 0.0
    %v832 = vand.u32 %v325, 4294901760
    %v833 = vsub.f32 %v325, %v832
    %v834 = vand.u32 %v833, 4294901760
    %835 = vmatpush1.xpose.msra.mxu0 %v834
    %836 = vmatprep.subr.mxu0 0.0
    %v837 = vand.u32 %v328, 4294901760
    %v838 = vsub.f32 %v328, %v837
    %v839 = vand.u32 %v838, 4294901760
    %840 = vmatpush1.xpose.msra.mxu0 %v839
    %841 = vmatprep.subr.mxu0 0.0
    %v842 = vand.u32 %v331, 4294901760
    %v843 = vsub.f32 %v331, %v842
    %v844 = vand.u32 %v843, 4294901760
    %845 = vmatpush1.xpose.msra.mxu0 %v844
    %846 = vmatprep.subr.mxu0 0.0
    %v847 = vand.u32 %v334, 4294901760
    %v848 = vsub.f32 %v334, %v847
    %v849 = vand.u32 %v848, 4294901760
    %850 = vmatpush1.xpose.msra.mxu0 %v849
    %851 = vmatprep.subr.mxu0 0.0
    %852 = vmatpush1.xpose.msra.mxu0 0.0
    %853 = vmatprep.subr.mxu0 0.0
    %854 = vmatpush1.xpose.msra.mxu0 0.0
    %855 = vmatprep.subr.mxu0 0.0
    %856 = vmatpush1.xpose.msra.mxu0 0.0
    %857 = vmatprep.subr.mxu0 0.0
    %858 = vmatpush1.xpose.msra.mxu0 0.0
    %859 = vmatprep.subr.mxu0 0.0
    %860 = vmatpush1.xpose.msra.mxu0 0.0
    %861 = vmatprep.subr.mxu0 0.0
    %862 = vmatpush1.xpose.msra.mxu0 0.0
    %863 = vmatprep.subr.mxu0 0.0
    %864 = vmatpush1.xpose.msra.mxu0 0.0
    %865 = vmatprep.subr.mxu0 0.0
    %866 = vmatpush1.xpose.msra.mxu0 0.0
    %867 = vmatprep.subr.mxu0 0.0
    %868 = vmatpush1.xpose.msra.mxu0 0.0
    %869 = vmatprep.subr.mxu0 0.0
    %870 = vmatpush1.xpose.msra.mxu0 0.0
    %871 = vmatprep.subr.mxu0 0.0
    %872 = vmatpush1.xpose.msra.mxu0 0.0
    %873 = vmatprep.subr.mxu0 0.0
    %874 = vmatpush1.xpose.msra.mxu0 0.0
    %875 = vmatprep.subr.mxu0 0.0
    %876 = vmatpush1.xpose.msra.mxu0 0.0
    %877 = vmatprep.subr.mxu0 0.0
    %878 = vmatpush1.xpose.msra.mxu0 0.0
    %879 = vmatprep.subr.mxu0 0.0
    %880 = vmatpush1.xpose.msra.mxu0 0.0
    %881 = vmatprep.subr.mxu0 0.0
    %882 = vmatpush1.xpose.msra.mxu0 0.0
    %883 = vmatprep.mubr.f32.mxu0 0.0
    %v884 = vand.u32 %v286, 4294901760
    %885 = vmatmul.mubr.f32.gmra.mrb[0].mxu0 %v884
    %v886 = vpop.f32.mrb[0].mxu0
    %v887 = vadd.f32 %v768, %v886
    %v888 = vpop.f32.mrb[0].mxu0
    %889 = vdwg.mxu0
    %890 = vmatprep.subr.mxu0 0.0
    %v891 = vand.u32 %v289, 4294901760
    %892 = vmatpush1.xpose.msra.mxu0 %v891
    %893 = vmatprep.subr.mxu0 0.0
    %v894 = vand.u32 %v292, 4294901760
    %895 = vmatpush1.xpose.msra.mxu0 %v894
    %896 = vmatprep.subr.mxu0 0.0
    %v897 = vand.u32 %v295, 4294901760
    %898 = vmatpush1.xpose.msra.mxu0 %v897
    %899 = vmatprep.subr.mxu0 0.0
    %v900 = vand.u32 %v298, 4294901760
    %901 = vmatpush1.xpose.msra.mxu0 %v900
    %902 = vmatprep.subr.mxu0 0.0
    %v903 = vand.u32 %v301, 4294901760
    %904 = vmatpush1.xpose.msra.mxu0 %v903
    %905 = vmatprep.subr.mxu0 0.0
    %v906 = vand.u32 %v304, 4294901760
    %907 = vmatpush1.xpose.msra.mxu0 %v906
    %908 = vmatprep.subr.mxu0 0.0
    %v909 = vand.u32 %v307, 4294901760
    %910 = vmatpush1.xpose.msra.mxu0 %v909
    %911 = vmatprep.subr.mxu0 0.0
    %v912 = vand.u32 %v310, 4294901760
    %913 = vmatpush1.xpose.msra.mxu0 %v912
    %914 = vmatprep.subr.mxu0 0.0
    %v915 = vand.u32 %v313, 4294901760
    %916 = vmatpush1.xpose.msra.mxu0 %v915
    %917 = vmatprep.subr.mxu0 0.0
    %v918 = vand.u32 %v316, 4294901760
    %919 = vmatpush1.xpose.msra.mxu0 %v918
    %920 = vmatprep.subr.mxu0 0.0
    %v921 = vand.u32 %v319, 4294901760
    %922 = vmatpush1.xpose.msra.mxu0 %v921
    %923 = vmatprep.subr.mxu0 0.0
    %v924 = vand.u32 %v322, 4294901760
    %925 = vmatpush1.xpose.msra.mxu0 %v924
    %926 = vmatprep.subr.mxu0 0.0
    %v927 = vand.u32 %v325, 4294901760
    %928 = vmatpush1.xpose.msra.mxu0 %v927
    %929 = vmatprep.subr.mxu0 0.0
    %v930 = vand.u32 %v328, 4294901760
    %931 = vmatpush1.xpose.msra.mxu0 %v930
    %932 = vmatprep.subr.mxu0 0.0
    %v933 = vand.u32 %v331, 4294901760
    %934 = vmatpush1.xpose.msra.mxu0 %v933
    %935 = vmatprep.subr.mxu0 0.0
    %v936 = vand.u32 %v334, 4294901760
    %937 = vmatpush1.xpose.msra.mxu0 %v936
    %938 = vmatprep.subr.mxu0 0.0
    %939 = vmatpush1.xpose.msra.mxu0 0.0
    %940 = vmatprep.subr.mxu0 0.0
    %941 = vmatpush1.xpose.msra.mxu0 0.0
    %942 = vmatprep.subr.mxu0 0.0
    %943 = vmatpush1.xpose.msra.mxu0 0.0
    %944 = vmatprep.subr.mxu0 0.0
    %945 = vmatpush1.xpose.msra.mxu0 0.0
    %946 = vmatprep.subr.mxu0 0.0
    %947 = vmatpush1.xpose.msra.mxu0 0.0
    %948 = vmatprep.subr.mxu0 0.0
    %949 = vmatpush1.xpose.msra.mxu0 0.0
    %950 = vmatprep.subr.mxu0 0.0
    %951 = vmatpush1.xpose.msra.mxu0 0.0
    %952 = vmatprep.subr.mxu0 0.0
    %953 = vmatpush1.xpose.msra.mxu0 0.0
    %954 = vmatprep.subr.mxu0 0.0
    %955 = vmatpush1.xpose.msra.mxu0 0.0
    %956 = vmatprep.subr.mxu0 0.0
    %957 = vmatpush1.xpose.msra.mxu0 0.0
    %958 = vmatprep.subr.mxu0 0.0
    %959 = vmatpush1.xpose.msra.mxu0 0.0
    %960 = vmatprep.subr.mxu0 0.0
    %961 = vmatpush1.xpose.msra.mxu0 0.0
    %962 = vmatprep.subr.mxu0 0.0
    %963 = vmatpush1.xpose.msra.mxu0 0.0
    %964 = vmatprep.subr.mxu0 0.0
    %965 = vmatpush1.xpose.msra.mxu0 0.0
    %966 = vmatprep.subr.mxu0 0.0
    %967 = vmatpush1.xpose.msra.mxu0 0.0
    %968 = vmatprep.subr.mxu0 0.0
    %969 = vmatpush1.xpose.msra.mxu0 0.0
    %970 = vmatprep.mubr.f32.mxu0 0.0
    %v971 = vand.u32 %v286, 4294901760
    %972 = vmatmul.mubr.f32.gmra.mrb[0].mxu0 %v971
    %v973 = vpop.f32.mrb[0].mxu0
    %v974 = vadd.f32 %v887, %v973
    %v975 = vpop.f32.mrb[0].mxu0
    %976 = vdwg.mxu0
    %v977 = vld [vmem:[%s0] sm:$0xff]
    %979 = vset.pattern.permute.xlu0 0
    %980 = vperm.xlu0 %979, %v977
    %v981 = vpop.permute.xlu0 %980
    %v983 = vmul.f32 %v974, %v981
    %984 = vst [vmem:[#allocation5] sm:$0xff] %v983
    // Predicated region
    $region18: #{tpu_custom_call.1} parent=1 // pred_check
      _
    $region19: #{tpu_custom_call.1} parent=1 // pred_check_branch
      %986 = sbr.rel (0) target = $region21
    $region20: #{tpu_custom_call.1} parent=1 // pred_region
      %s988 = ssub.s32 128, 128
      %989 = vsyncadd [#allocation4], %s988
      %s991 = sshll.u32 [#allocation5], 4
      %s992 = int_to_ptr.vmem [resolvable:$true] %s991
      %994 = dma.vmem_to_hbm [thread:$0]  %s992, 128, %s3, [#allocation4]
    $region21: #{tpu_custom_call.1} parent=1 // pred_fallthru
      _
    // Predicated region
    $region22: #{tpu_custom_call.1} parent=1 // pred_check
      _
    $region23: #{tpu_custom_call.1} parent=1 // pred_check_branch
      %996 = sbr.rel (0) target = $region25
    $region24: #{tpu_custom_call.1} parent=1 // pred_region
      %997 = dma.done [#allocation4], 128
    $region25: #{tpu_custom_call.1} parent=1 // pred_fallthru
      _
    %998 = vsyncpa [#allocation3], 1
    %999 = vsyncpa [#allocation4], 1

</llo_original>
